<compile_context>
chip_gen: v6e
topology: v6e:2x2x1
jax: 0.10.0
libtpu: 0.0.40
codegen_flags: <defaults>
</compile_context>

<pallas_src>
import jax
import jax.numpy as jnp
from jax.experimental import pallas as pl
from jax.experimental.pallas import tpu as pltpu


# ----------------------------------------------------------------------------
# Kernels
# ----------------------------------------------------------------------------

def _attn_softmax_kernel(hid_ref, enc_ref, mask_ref, out_ref):
    """Full-sequence path: dot scores + masked softmax for one batch tile.

    hid_ref : (1, tb, H)   enc_ref : (L, tb, H)    (native layouts, streamed)
    mask_ref: (tb, L) i32  out_ref : (tb, L) f32   (lane-dense blocks)
    """
    # Multiply in the input dtype (bf16 VALU on v6e/v7x), accumulate H in f32.
    prod = enc_ref[...] * hid_ref[...]                        # (L, tb, H)
    scores_lb = jnp.sum(prod, axis=2, dtype=jnp.float32)      # (L, tb)
    # Tiny in-register transpose so mask / softmax / store are lane-dense in L.
    scores = scores_lb.T                                      # (tb, L)
    scores = jnp.where(mask_ref[...] == 0, jnp.float32(-1e10), scores)
    scores = scores - jnp.max(scores, axis=1, keepdims=True)
    p = jnp.exp(scores)
    out_ref[...] = (p / jnp.sum(p, axis=1, keepdims=True)).astype(out_ref.dtype)


def _attn_scores_kernel(hid_ref, enc_ref, mask_ref, out_ref):
    """L-tiled path: masked dot scores only (softmax finished in the wrapper).

    hid_ref : (1, tb, H)    enc_ref : (tl, tb, H)
    mask_ref: (tb, tl) i32  out_ref : (tb, tl) f32
    """
    prod = enc_ref[...] * hid_ref[...]                        # (tl, tb, H)
    scores = jnp.sum(prod, axis=2, dtype=jnp.float32).T       # (tb, tl)
    out_ref[...] = jnp.where(mask_ref[...] == 0, jnp.float32(-1e10),
                             scores).astype(out_ref.dtype)


# ----------------------------------------------------------------------------
# Tile / budget selection
# ----------------------------------------------------------------------------

def _pad_up(x, m):
    return -(-x // m) * m


def _sublane_pack(itemsize):
    # Packed sublane granularity: 8 rows (4B dtypes), 16 (2B), 32 (1B).
    return max(8, 32 // max(int(itemsize), 1))


def _chip_config():
    kind = ""
    try:
        kind = jax.devices()[0].device_kind.lower()
    except Exception:  # no device info -> stay conservative
        pass
    if "v5" in kind or "v6" in kind:
        # 128 MiB physical VMEM, lower HBM BW -> big streamed tiles.
        return {"budget": 48 << 20, "vmem_limit": 96 << 20, "min_steps": 2}
    if "v7" in kind or "7x" in kind:
        # 64 MiB VMEM per TensorCore, 2 TCs -> smaller tiles, >=4 grid steps.
        return {"budget": 24 << 20, "vmem_limit": 44 << 20, "min_steps": 4}
    # Unknown chip: use the conservative (v7x-like) sizing.
    return {"budget": 24 << 20, "vmem_limit": 44 << 20, "min_steps": 4}


def _block_bytes(tb, lblk, H, in_itemsize):
    """Conservative VMEM bytes for one grid step: (sublane, 128) tile padding,
    double buffering of the streamed buffers, plus compute temporaries."""
    Hp = _pad_up(H, 128)
    tb_in = _pad_up(tb, _sublane_pack(in_itemsize))
    tb32 = _pad_up(tb, 8)
    lane_l = _pad_up(lblk, 128)
    enc = lblk * tb_in * Hp * in_itemsize
    hid = tb_in * Hp * in_itemsize
    msk = tb32 * lane_l * 4
    out = tb32 * lane_l * 4
    tmp = lblk * tb32 * Hp * 4                      # f32 reduce temporary
    if in_itemsize < 4:
        tmp += lblk * tb_in * Hp * in_itemsize      # product in input dtype
    return 2 * (enc + hid + msk + out) + tmp


def _batch_tile_candidates(B, in_itemsize):
    sub = _sublane_pack(in_itemsize)
    return sorted({t for t in range(1, B + 1)
                   if B % t == 0 and (t % sub == 0 or t == B)})


def _select_plan(B, L, H, in_itemsize, budget, min_steps):
    """Returns ("softmax", tb, None) or ("scores", tb, tl)."""
    cands = _batch_tile_candidates(B, in_itemsize)
    fit_full = [t for t in cands if _block_bytes(t, L, H, in_itemsize) <= budget]
    pipelined = [t for t in fit_full if B // t >= min_steps]
    if pipelined:
        return "softmax", max(pipelined), None

    # Small batch / huge L: tile the sequence axis, finish softmax in wrapper.
    tl_cands = [t for t in range(128, L, 128) if L % t == 0]
    best = None  # (key=(meets_min_steps, block_elems), tb, tl)
    for tb in cands:
        for tl in tl_cands:
            if _block_bytes(tb, tl, H, in_itemsize) > budget:
                continue
            steps = (B // tb) * (L // tl)
            if steps < 2:
                continue
            key = (steps >= min_steps, tb * tl)
            if best is None or key > best[0]:
                best = (key, tb, tl)
    if best is not None:
        return "scores", best[1], best[2]

    if fit_full:
        # Correct but possibly a single grid step (no pipelining).
        return "softmax", max(fit_full), None

    raise ValueError(
        f"Attention kernel: no (batch, sequence) tiling of (B={B}, L={L}, "
        f"H={H}) fits the VMEM budget of {budget} bytes. Raise budget_bytes /"
        " vmem_limit_bytes, or pad the sequence length to a multiple of 128 "
        "so the sequence axis can be tiled.")


# ----------------------------------------------------------------------------
# pallas_call wrappers
# ----------------------------------------------------------------------------

def _call_softmax_kernel(hidden, enc, mask_i, tb, vmem_limit):
    L, B, H = enc.shape
    return pl.pallas_call(
        _attn_softmax_kernel,
        out_shape=jax.ShapeDtypeStruct((B, L), jnp.float32),
        grid=(B // tb,),
        in_specs=[
            pl.BlockSpec((1, tb, H), lambda b: (0, b, 0)),     # hidden
            pl.BlockSpec((L, tb, H), lambda b: (0, b, 0)),     # encoder (streamed)
            pl.BlockSpec((tb, L), lambda b: (b, 0)),           # mask (native (B,L))
        ],
        out_specs=pl.BlockSpec((tb, L), lambda b: (b, 0)),
        compiler_params=pltpu.CompilerParams(
            dimension_semantics=("parallel",),                 # megacore split
            vmem_limit_bytes=vmem_limit,
        ),
    )(hidden, enc, mask_i)


def _call_scores_kernel(hidden, enc, mask_i, tb, tl, vmem_limit):
    L, B, H = enc.shape
    return pl.pallas_call(
        _attn_scores_kernel,
        out_shape=jax.ShapeDtypeStruct((B, L), jnp.float32),
        grid=(B // tb, L // tl),
        in_specs=[
            pl.BlockSpec((1, tb, H), lambda b, l: (0, b, 0)),  # hidden (not re-DMA'd over l)
            pl.BlockSpec((tl, tb, H), lambda b, l: (l, b, 0)), # encoder (streamed over L)
            pl.BlockSpec((tb, tl), lambda b, l: (b, l)),       # mask
        ],
        out_specs=pl.BlockSpec((tb, tl), lambda b, l: (b, l)),
        compiler_params=pltpu.CompilerParams(
            dimension_semantics=("parallel", "parallel"),
            vmem_limit_bytes=vmem_limit,
        ),
    )(hidden, enc, mask_i)


def attention_forward(hidden, encoder_outputs, mask, *,
                      budget_bytes=None, vmem_limit_bytes=None, min_steps=None):
    """hidden: (1, B, H), encoder_outputs: (L, B, H), mask: (B, L) -> (B, 1, L)."""
    L, B, H = encoder_outputs.shape
    assert hidden.shape == (1, B, H), (hidden.shape, encoder_outputs.shape)
    assert mask.shape == (B, L), (mask.shape, (B, L))

    cfg = _chip_config()
    budget = cfg["budget"] if budget_bytes is None else budget_bytes
    vmem_limit = cfg["vmem_limit"] if vmem_limit_bytes is None else vmem_limit_bytes
    steps = cfg["min_steps"] if min_steps is None else min_steps

    mask_i = mask.astype(jnp.int32)
    in_itemsize = jnp.dtype(encoder_outputs.dtype).itemsize
    kind, tb, tl = _select_plan(B, L, H, in_itemsize, budget, steps)

    if kind == "softmax":
        probs = _call_softmax_kernel(hidden, encoder_outputs, mask_i, tb, vmem_limit)
    else:
        scores = _call_scores_kernel(hidden, encoder_outputs, mask_i, tb, tl,
                                     vmem_limit)
        # O(B*L) softmax on the tiny score matrix: free vs the B*L*H stream.
        probs = jax.nn.softmax(scores, axis=1)
    return probs[:, None, :]


# ----------------------------------------------------------------------------
# Reference + self-test
# ----------------------------------------------------------------------------

def _reference(hidden, encoder_outputs, mask):
    scores = jnp.sum(hidden * encoder_outputs, axis=2)    # (L, B)
    scores = scores.T                                     # (B, L)
    scores = jnp.where(mask == 0, -1e10, scores)
    return jax.nn.softmax(scores, axis=1)[:, None, :]     # (B, 1, L)


if __name__ == "__main__":
    # --- Test 1: demo shapes (softmax-in-kernel path) ------------------------
    L, B, H = 8, 2, 32
    k1, k2 = jax.random.split(jax.random.PRNGKey(0))
    hidden = jax.random.normal(k1, (1, B, H), dtype=jnp.float32)
    encoder_outputs = jax.random.normal(k2, (L, B, H), dtype=jnp.float32)
    lengths = jnp.array([L, 5], dtype=jnp.int32)
    mask = (jnp.arange(L)[None, :] < lengths[:, None]).astype(jnp.int32)  # (B, L)

    out = jax.block_until_ready(
        jax.jit(attention_forward)(hidden, encoder_outputs, mask))
    ref = _reference(hidden, encoder_outputs, mask)
    assert out.shape == (B, 1, L)
    assert jnp.allclose(out, ref, atol=1e-5, rtol=1e-5), float(
        jnp.max(jnp.abs(out - ref)))

    # --- Test 2: exercise the L-tiled scores path (small batch, longer seq) --
    L2, B2, H2 = 256, 8, 32
    k3, k4 = jax.random.split(jax.random.PRNGKey(1))
    hidden2 = jax.random.normal(k3, (1, B2, H2), dtype=jnp.float32)
    enc2 = jax.random.normal(k4, (L2, B2, H2), dtype=jnp.float32)
    lengths2 = (jnp.arange(1, B2 + 1) * (L2 // B2)).astype(jnp.int32)
    mask2 = (jnp.arange(L2)[None, :] < lengths2[:, None]).astype(jnp.int32)

    tiled = jax.jit(lambda h, e, m: jax.nn.softmax(
        _call_scores_kernel(h, e, m, 8, 128, 32 << 20), axis=1)[:, None, :])
    out2 = jax.block_until_ready(tiled(hidden2, enc2, mask2))
    ref2 = _reference(hidden2, enc2, mask2)
    assert out2.shape == (B2, 1, L2)
    assert jnp.allclose(out2, ref2, atol=1e-5, rtol=1e-5), float(
        jnp.max(jnp.abs(out2 - ref2)))

    print("KERNEL_OK")
</pallas_src>

<mosaic_0001>
module attributes {stable_mosaic.version = 11 : i64} {
  func.func @_attn_softmax_kernel(%arg0: i32, %arg1: memref<1x2x32xf32, #tpu.memory_space<vmem>>, %arg2: memref<8x2x32xf32, #tpu.memory_space<vmem>>, %arg3: memref<2x8xi32, #tpu.memory_space<vmem>>, %arg4: memref<2x8xf32, #tpu.memory_space<vmem>>) attributes {dimension_semantics = [#tpu.dimension_semantics<parallel>], iteration_bounds = array<i64: 1>, scalar_prefetch = 0 : i64, scratch_operands = 0 : i64, tpu.core_type = #tpu.core_type<tc>, window_params = [{transform_indices = @transform_0, window_bounds = array<i64: 1, 2, 32>}, {transform_indices = @transform_1, window_bounds = array<i64: 8, 2, 32>}, {transform_indices = @transform_2, window_bounds = array<i64: 2, 8>}, {transform_indices = @transform_3, window_bounds = array<i64: 2, 8>}]} {
    %c0 = arith.constant 0 : index
    %c0_0 = arith.constant 0 : index
    %c0_1 = arith.constant 0 : index
    %0 = vector.load %arg2[%c0, %c0_0, %c0_1] : memref<8x2x32xf32, #tpu.memory_space<vmem>>, vector<8x2x32xf32>
    %c0_2 = arith.constant 0 : index
    %c0_3 = arith.constant 0 : index
    %c0_4 = arith.constant 0 : index
    %1 = vector.load %arg1[%c0_2, %c0_3, %c0_4] : memref<1x2x32xf32, #tpu.memory_space<vmem>>, vector<1x2x32xf32>
    %2 = vector.broadcast %1 : vector<1x2x32xf32> to vector<8x2x32xf32>
    %3 = arith.mulf %0, %2 : vector<8x2x32xf32>
    %cst = arith.constant dense<0.000000e+00> : vector<8x2xf32>
    %4 = vector.multi_reduction <add>, %3, %cst [2] : vector<8x2x32xf32> to vector<8x2xf32>
    %5 = tpu.transpose %4, [1, 0] : vector<8x2xf32> -> vector<2x8xf32>
    %c0_5 = arith.constant 0 : index
    %c0_6 = arith.constant 0 : index
    %6 = vector.load %arg3[%c0_5, %c0_6] : memref<2x8xi32, #tpu.memory_space<vmem>>, vector<2x8xi32>
    %c0_i32 = arith.constant 0 : i32
    %7 = vector.broadcast %c0_i32 : i32 to vector<2x8xi32>
    %8 = arith.cmpi eq, %6, %7 : vector<2x8xi32>
    %cst_7 = arith.constant -1.000000e+10 : f32
    %9 = vector.broadcast %cst_7 : f32 to vector<2x8xf32>
    %10 = arith.select %8, %9, %5 : vector<2x8xi1>, vector<2x8xf32>
    %cst_8 = arith.constant dense<0xFF800000> : vector<2xf32>
    %11 = vector.multi_reduction <maximumf>, %10, %cst_8 [1] : vector<2x8xf32> to vector<2xf32>
    %12 = vector.shape_cast %11 : vector<2xf32> to vector<2x1xf32>
    %13 = vector.broadcast %12 : vector<2x1xf32> to vector<2x8xf32>
    %14 = arith.subf %10, %13 : vector<2x8xf32>
    %15 = math.exp %14 : vector<2x8xf32>
    %cst_9 = arith.constant dense<0.000000e+00> : vector<2xf32>
    %16 = vector.multi_reduction <add>, %15, %cst_9 [1] : vector<2x8xf32> to vector<2xf32>
    %17 = vector.shape_cast %16 : vector<2xf32> to vector<2x1xf32>
    %18 = vector.broadcast %17 : vector<2x1xf32> to vector<2x8xf32>
    %19 = arith.divf %15, %18 : vector<2x8xf32>
    %c0_10 = arith.constant 0 : index
    %c0_11 = arith.constant 0 : index
    %20 = vector.load %arg4[%c0_10, %c0_11] : memref<2x8xf32, #tpu.memory_space<vmem>>, vector<2x8xf32>
    tpu.vector_store %arg4[%c0_10, %c0_11], %19 {strides = array<i32>} : memref<2x8xf32, #tpu.memory_space<vmem>>, vector<2x8xf32>,
    return
  }
  func.func @transform_0(%arg0: i32) -> (i32, i32, i32) {
    %c0_i32 = arith.constant 0 : i32
    %c0_i32_0 = arith.constant 0 : i32
    %c0_i32_1 = arith.constant 0 : i32
    return %c0_i32, %arg0, %c0_i32_0 : i32, i32, i32
  }
  func.func @transform_1(%arg0: i32) -> (i32, i32, i32) {
    %c0_i32 = arith.constant 0 : i32
    %c0_i32_0 = arith.constant 0 : i32
    %c0_i32_1 = arith.constant 0 : i32
    return %c0_i32, %arg0, %c0_i32_0 : i32, i32, i32
  }
  func.func @transform_2(%arg0: i32) -> (i32, i32) {
    %c0_i32 = arith.constant 0 : i32
    %c0_i32_0 = arith.constant 0 : i32
    return %arg0, %c0_i32 : i32, i32
  }
  func.func @transform_3(%arg0: i32) -> (i32, i32) {
    %c0_i32 = arith.constant 0 : i32
    %c0_i32_0 = arith.constant 0 : i32
    return %arg0, %c0_i32 : i32, i32
  }
}

</mosaic_0001>

<llo_original>
// kernel: attention_forward.1
$region0: #{attention_forward.1}
  #allocation0 [shape = 'u32[]', space=smem, size = 0x4, offset = 0x4, fixed_abs, tag = 'smem constant byte address 0x4 - core index']
  #allocation1 [shape = 'u32[144,128]{1,0:T(1,128)}', space=vmem, size = 0x12000, scoped, tag = 'internal scratch']
  %s0 = inlined_call_operand.hbm [shape: f32[1,2,32], index: 0, kind: input, shape index: {}]
  %s1 = inlined_call_operand.hbm [shape: f32[8,2,32], index: 1, kind: input, shape index: {}]
  %s2 = inlined_call_operand.vmem [shape: s32[2,8], index: 2, kind: input, shape index: {}]
  %s3 = inlined_call_operand.hbm [shape: f32[2,8], index: 3, kind: output, shape index: {}]
  %s4 = sld [smem:[#allocation0]]
  $region30: #{attention_forward.1} parent=0
    _
  %s6 = ssub.s32 1, %s4
  %s7 = scalar_select 0, %s6, %s4
  $region1: #{attention_forward.1} parent=0
    #allocation2 [shape = 'u8[1024]{0}', space=vmem, size = 0x400, scoped, tag = 'input window, operand 0, single buffered']
    #allocation3 [shape = 's32[1]{0}', space=sflag, size = 0x4, scoped, tag = 'scoped memory for attention_forward.1']
    #allocation4 [shape = 's32[1]{0}', space=sflag, size = 0x4, scoped, tag = 'scoped memory for attention_forward.1']
    #allocation5 [shape = 'u8[8192]{0}', space=vmem, size = 0x2000, scoped, tag = 'input window, operand 1, single buffered']
    #allocation6 [shape = 's32[1]{0}', space=sflag, size = 0x4, scoped, tag = 'scoped memory for attention_forward.1']
    #allocation7 [shape = 'u8[1024]{0}', space=vmem, size = 0x400, scoped, tag = 'output window, operand 0, single buffered']
    %8 = vsyncpa [#allocation3], 0
    %9 = vsyncpa [#allocation6], 0
    %10 = vsyncpa [#allocation4], 0
    // Predicated region
    $region2: #{attention_forward.1} parent=1 // pred_check
      _
    $region3: #{attention_forward.1} parent=1 // pred_check_branch
      %12 = sbr.rel (0) target = $region5
    $region4: #{attention_forward.1} parent=1 // pred_region
      %s14 = ssub.s32 32, 32
      %15 = vsyncadd [#allocation3], %s14
      %s17 = sshll.u32 [#allocation2], 4
      %s18 = int_to_ptr.vmem [resolvable:$true] %s17
      %20 = dma.hbm_to_vmem [thread:$0]  %s0, 32, %s18, [#allocation3]
    $region5: #{attention_forward.1} parent=1 // pred_fallthru
      _
    // Predicated region
    $region6: #{attention_forward.1} parent=1 // pred_check
      _
    $region7: #{attention_forward.1} parent=1 // pred_check_branch
      %22 = sbr.rel (0) target = $region9
    $region8: #{attention_forward.1} parent=1 // pred_region
      %s24 = ssub.s32 256, 256
      %25 = vsyncadd [#allocation6], %s24
      %s26 = sshll.u32 [#allocation5], 4
      %s27 = int_to_ptr.vmem [resolvable:$true] %s26
      %32 = dma.hbm_to_vmem [thread:$0]  %s1, 256, %s27, [#allocation6], 32, 32, 2
    $region9: #{attention_forward.1} parent=1 // pred_fallthru
      _
    // Predicated region
    $region10: #{attention_forward.1} parent=1 // pred_check
      _
    $region11: #{attention_forward.1} parent=1 // pred_check_branch
      %34 = sbr.rel (0) target = $region13
    $region12: #{attention_forward.1} parent=1 // pred_region
      _
    $region13: #{attention_forward.1} parent=1 // pred_fallthru
      _
    // Predicated region
    $region14: #{attention_forward.1} parent=1 // pred_check
      _
    $region15: #{attention_forward.1} parent=1 // pred_check_branch
      %36 = sbr.rel (0) target = $region17
    $region16: #{attention_forward.1} parent=1 // pred_region
      %37 = dma.done [#allocation3], 32
    $region17: #{attention_forward.1} parent=1 // pred_fallthru
      _
    // Predicated region
    $region18: #{attention_forward.1} parent=1 // pred_check
      _
    $region19: #{attention_forward.1} parent=1 // pred_check_branch
      %39 = sbr.rel (0) target = $region21
    $region20: #{attention_forward.1} parent=1 // pred_region
      %40 = dma.done [#allocation6], 256
    $region21: #{attention_forward.1} parent=1 // pred_fallthru
      _
    %v41 = vld [vmem:[#allocation5] sm:$0x3]
    %v42 = vld [vmem:[#allocation5 + $0x2] sm:$0x3]
    %v43 = vld [vmem:[#allocation5 + $0x4] sm:$0x3]
    %v44 = vld [vmem:[#allocation5 + $0x6] sm:$0x3]
    %v45 = vld [vmem:[#allocation5 + $0x8] sm:$0x3]
    %v46 = vld [vmem:[#allocation5 + $0xa] sm:$0x3]
    %v47 = vld [vmem:[#allocation5 + $0xc] sm:$0x3]
    %v48 = vld [vmem:[#allocation5 + $0xe] sm:$0x3]
    %v49 = vld [vmem:[#allocation2] sm:$0x3]
    %v50 = vmul.f32 %v41, %v49
    %v51 = vmul.f32 %v42, %v49
    %v52 = vmul.f32 %v43, %v49
    %v53 = vmul.f32 %v44, %v49
    %v54 = vmul.f32 %v45, %v49
    %v55 = vmul.f32 %v46, %v49
    %v56 = vmul.f32 %v47, %v49
    %v57 = vmul.f32 %v48, %v49
    %vm58 = vcmask 254976
    %v59 = vsel %vm58, %v50, 0.0
    %60 = vadd.xlane.f32.xlu0 %v59
    %v61 = vpop.xlane.xlu0 %60
    %v62 = vsel %vm58, %v51, 0.0
    %63 = vadd.xlane.f32.xlu0 %v62
    %v64 = vpop.xlane.xlu0 %63
    %v65 = vsel %vm58, %v52, 0.0
    %66 = vadd.xlane.f32.xlu0 %v65
    %v67 = vpop.xlane.xlu0 %66
    %v68 = vsel %vm58, %v53, 0.0
    %69 = vadd.xlane.f32.xlu0 %v68
    %v70 = vpop.xlane.xlu0 %69
    %v71 = vsel %vm58, %v54, 0.0
    %72 = vadd.xlane.f32.xlu0 %v71
    %v73 = vpop.xlane.xlu0 %72
    %v74 = vsel %vm58, %v55, 0.0
    %75 = vadd.xlane.f32.xlu0 %v74
    %v76 = vpop.xlane.xlu0 %75
    %v77 = vsel %vm58, %v56, 0.0
    %78 = vadd.xlane.f32.xlu0 %v77
    %v79 = vpop.xlane.xlu0 %78
    %v80 = vsel %vm58, %v57, 0.0
    %81 = vadd.xlane.f32.xlu0 %v80
    %v82 = vpop.xlane.xlu0 %81
    %v91 = vlaneseq
    %v92 = vand.u32 %v91, 127
    %v93 = vlaneseq
    %v94 = vshrl.u32 %v93, 7
    %v95 = vsub.s32 %v92, %v94
    %v96 = vrot.slane %v61, %v95
    %v97 = vlaneseq
    %v98 = vshrl.u32 %v97, 7
    %v99 = vsub.s32 %v92, %v98
    %v100 = vrot.slane %v64, %v99
    %v101 = vlaneseq
    %v102 = vshrl.u32 %v101, 7
    %v103 = vsub.s32 %v92, %v102
    %v104 = vrot.slane %v67, %v103
    %v105 = vlaneseq
    %v106 = vshrl.u32 %v105, 7
    %v107 = vsub.s32 %v92, %v106
    %v108 = vrot.slane %v70, %v107
    %v109 = vlaneseq
    %v110 = vshrl.u32 %v109, 7
    %v111 = vsub.s32 %v92, %v110
    %v112 = vrot.slane %v73, %v111
    %v113 = vlaneseq
    %v114 = vshrl.u32 %v113, 7
    %v115 = vsub.s32 %v92, %v114
    %v116 = vrot.slane %v76, %v115
    %v117 = vlaneseq
    %v118 = vshrl.u32 %v117, 7
    %v119 = vsub.s32 %v92, %v118
    %v120 = vrot.slane %v79, %v119
    %v121 = vlaneseq
    %v122 = vshrl.u32 %v121, 7
    %v123 = vsub.s32 %v92, %v122
    %v124 = vrot.slane %v82, %v123
    %vm125 = vcmask 1041409
    %v126 = vsel %vm125, %v100, %v96
    %vm127 = vcmask 1042434
    %v128 = vsel %vm127, %v104, %v126
    %vm129 = vcmask 1043459
    %v130 = vsel %vm129, %v108, %v128
    %vm131 = vcmask 1044484
    %v132 = vsel %vm131, %v112, %v130
    %vm133 = vcmask 1045509
    %v134 = vsel %vm133, %v116, %v132
    %vm135 = vcmask 1046534
    %v136 = vsel %vm135, %v120, %v134
    %vm137 = vcmask 1047559
    %v138 = vsel %vm137, %v124, %v136
    %140 = vxpose.xlu0.b32.start [1/16] %v138, 128
    %141 = vxpose.xlu0.b32.cont [2/16] 0.0, 128
    %142 = vxpose.xlu0.b32.cont [3/16] 0.0, 128
    %143 = vxpose.xlu0.b32.cont [4/16] 0.0, 128
    %144 = vxpose.xlu0.b32.cont [5/16] 0.0, 128
    %145 = vxpose.xlu0.b32.cont [6/16] 0.0, 128
    %146 = vxpose.xlu0.b32.cont [7/16] 0.0, 128
    %147 = vxpose.xlu0.b32.cont [8/16] 0.0, 128
    %148 = vxpose.xlu0.b32.cont [9/16] 0.0, 128
    %149 = vxpose.xlu0.b32.cont [10/16] 0.0, 128
    %150 = vxpose.xlu0.b32.cont [11/16] 0.0, 128
    %151 = vxpose.xlu0.b32.cont [12/16] 0.0, 128
    %152 = vxpose.xlu0.b32.cont [13/16] 0.0, 128
    %153 = vxpose.xlu0.b32.cont [14/16] 0.0, 128
    %154 = vxpose.xlu0.b32.cont [15/16] 0.0, 128
    %155 = vxpose.xlu0.b32.end [16/16] 0.0, 128
    %v156 = vpop.trf.xlu0
    %v157 = vpop.trf.xlu0
    %v158 = vpop.trf.xlu0
    %v159 = vpop.trf.xlu0
    %v160 = vpop.trf.xlu0
    %v161 = vpop.trf.xlu0
    %v162 = vpop.trf.xlu0
    %v163 = vpop.trf.xlu0
    %v164 = vpop.trf.xlu0
    %v165 = vpop.trf.xlu0
    %v166 = vpop.trf.xlu0
    %v167 = vpop.trf.xlu0
    %v168 = vpop.trf.xlu0
    %v169 = vpop.trf.xlu0
    %v170 = vpop.trf.xlu0
    %v171 = vpop.trf.xlu0
    %v172 = vld [vmem:[%s2] sm:$0x3]
    %vm173 = vcmp.eq.s32.totalorder %v172, 0
    %v174 = vsel %vm173, -1e+10, %v156
    %vm175 = vcmask 58368
    %v176 = vsel %vm175, %v174, -inf
    %177 = vmax.xlane.f32.xlu0 %v176
    %v178 = vpop.xlane.xlu0 %177
    %v179 = vsub.f32 %v174, %v178
    %v180 = vmul.f32 %v179, 1.442695
    %v181 = vpow.pop %v180
    %v182 = vsel %vm175, %v181, 0.0
    %183 = vadd.xlane.f32.xlu0 %v182
    %v184 = vpop.xlane.xlu0 %183
    %v185 = vrcp.pop %v184
    %v186 = vmul.f32 %v181, %v185
    %187 = vst.msk [vmem:[#allocation7] sm:$0x3] %vm175, %v186
    // Predicated region
    $region22: #{attention_forward.1} parent=1 // pred_check
      _
    $region23: #{attention_forward.1} parent=1 // pred_check_branch
      %189 = sbr.rel (0) target = $region25
    $region24: #{attention_forward.1} parent=1 // pred_region
      %s191 = ssub.s32 32, 32
      %192 = vsyncadd [#allocation4], %s191
      %s194 = sshll.u32 [#allocation7], 4
      %s195 = int_to_ptr.vmem [resolvable:$true] %s194
      %197 = dma.vmem_to_hbm [thread:$0]  %s195, 32, %s3, [#allocation4]
    $region25: #{attention_forward.1} parent=1 // pred_fallthru
      _
    // Predicated region
    $region26: #{attention_forward.1} parent=1 // pred_check
      _
    $region27: #{attention_forward.1} parent=1 // pred_check_branch
      %199 = sbr.rel (0) target = $region29
    $region28: #{attention_forward.1} parent=1 // pred_region
      %200 = dma.done [#allocation4], 32
    $region29: #{attention_forward.1} parent=1 // pred_fallthru
      _
    %201 = vsyncpa [#allocation3], 1
    %202 = vsyncpa [#allocation6], 1
    %203 = vsyncpa [#allocation4], 1

</llo_original>
